<compile_context>
chip_gen: v7x
topology: tpu7x:2x2x1
jax: 0.10.0
libtpu: 0.0.40
codegen_flags: <defaults>
</compile_context>

<pallas_src>
import jax
import jax.numpy as jnp
from jax.experimental import pallas as pl
from jax.experimental.pallas import tpu as pltpu


# ----------------------------- Pallas kernel ------------------------------ #
def _fused_kernel(x_ref, bmix_ref, bias_ref, mhw_ref, o_ref):
    # x:    (N*Cin*D, H*W)        activation rows, VMEM-resident
    # bmix: (N*Cout*Do, N*Cin*D)  kron(I_N, conv_w, md^T): channel mix + D-interp
    # bias: (N*Cout*Do, 1)        per-output-row bias (interp of const = const)
    # mhw:  (H*W, TN)             column tile of kron(mh, mw)  (H/W interp)
    # o:    (N*Cout*Do, TN)       lane-dense output tile
    t = jnp.dot(x_ref[...], mhw_ref[...], preferred_element_type=jnp.float32)
    o_ref[...] = (
        jnp.dot(bmix_ref[...], t, preferred_element_type=jnp.float32)
        + bias_ref[...]
    ).astype(o_ref.dtype)


# ------------------------------ glue (JAX) -------------------------------- #
def _interp_matrix(in_size, out_size):
    """Linear-interpolation matrix (in_size, out_size), align_corners=True."""
    o = jnp.arange(out_size, dtype=jnp.float32)
    if out_size == 1:
        src = jnp.zeros((1,), jnp.float32)
    else:
        src = o * (in_size - 1) / (out_size - 1)
    i0 = jnp.clip(jnp.floor(src).astype(jnp.int32), 0, in_size - 1)
    i1 = jnp.clip(i0 + 1, 0, in_size - 1)
    frac = src - i0.astype(jnp.float32)
    cols = jnp.arange(out_size)
    m = jnp.zeros((in_size, out_size), jnp.float32)
    m = m.at[i0, cols].add(1.0 - frac)
    m = m.at[i1, cols].add(frac)
    return m


def _pick_col_tile(total, cap=1024):
    """Largest multiple of 128 dividing `total` and <= cap; else the full dim."""
    for t in (1024, 512, 256, 128):
        if t <= cap and total % t == 0:
            return t
    return total


def fcn_upsampling_forward(x, conv_w, conv_b, scale_factor=2):
    """x: (N, Cin, D, H, W); conv_w: (Cout, Cin, 1, 1, 1) (PyTorch Conv3d layout)
    or (Cout, Cin); conv_b: (Cout,)."""
    n, cin, d, h, w = x.shape
    w_oc = conv_w.reshape(conv_w.shape[0], cin).astype(jnp.float32)   # (Cout, Cin)
    cout = w_oc.shape[0]
    sf = 2 ** (scale_factor - 1)          # BrainMaGe semantics (NOT torch default)
    do, ho, wo = d * sf, h * sf, w * sf

    # Separable interpolation matrices (tiny).
    md = _interp_matrix(d, do)            # (D, Do)
    mh = _interp_matrix(h, ho)            # (H, Ho)
    mw = _interp_matrix(w, wo)            # (W, Wo)

    # Column operator: in-plane (H,W) interpolation.
    m_hw = jnp.kron(mh, mw)                                           # (H*W, Ho*Wo)

    # Row operator: batch-block-diagonal (channel mix  x  depth interp).
    # B[(n,co,Do),(n',ci,d)] = delta_{nn'} * conv_w[co,ci] * md[d,Do]
    b_mix = jnp.kron(jnp.eye(n, dtype=jnp.float32),
                     jnp.kron(w_oc, md.T))          # (N*Cout*Do, N*Cin*D)

    # Bias per output row (trilinear interp of a constant field is the constant).
    bias_rows = jnp.tile(jnp.repeat(conv_b.astype(jnp.float32), do), n)
    bias_rows = bias_rows.reshape(n * cout * do, 1)

    # Activation rows ordered (n, cin, d) -- contiguous reshape, no transpose.
    x2d = x.reshape(n * cin * d, h * w).astype(jnp.float32)

    rows_in, rows_out = n * cin * d, n * cout * do
    hw, out_cols = h * w, ho * wo
    tn = _pick_col_tile(out_cols)

    out2d = pl.pallas_call(
        _fused_kernel,
        out_shape=jax.ShapeDtypeStruct((rows_out, out_cols), jnp.float32),
        grid=(out_cols // tn,),
        in_specs=[
            pl.BlockSpec((rows_in, hw), lambda j: (0, 0)),       # x       (resident)
            pl.BlockSpec((rows_out, rows_in), lambda j: (0, 0)), # row-mix (resident)
            pl.BlockSpec((rows_out, 1), lambda j: (0, 0)),       # bias    (resident)
            pl.BlockSpec((hw, tn), lambda j: (0, j)),            # kron(mh,mw) tile
        ],
        out_specs=pl.BlockSpec((rows_out, tn), lambda j: (0, j)),
        compiler_params=pltpu.CompilerParams(dimension_semantics=("parallel",)),
    )(x2d, b_mix, bias_rows, m_hw)

    # Rows are (n, cout, Do); cols are (Ho, Wo) -> direct reshape, no transpose.
    return out2d.reshape(n, cout, do, ho, wo)


def reference_forward(x, conv_w, conv_b, scale_factor=2):
    """Pure-jnp reference for correctness checking."""
    n, cin, d, h, w = x.shape
    w_oc = conv_w.reshape(conv_w.shape[0], cin)
    y = jnp.einsum("ncdhw,oc->nodhw", x, w_oc) + conv_b[None, :, None, None, None]
    sf = 2 ** (scale_factor - 1)
    y = jnp.einsum("ncdhw,dD->ncDhw", y, _interp_matrix(d, d * sf))
    y = jnp.einsum("ncdhw,hH->ncdHw", y, _interp_matrix(h, h * sf))
    y = jnp.einsum("ncdhw,wW->ncdhW", y, _interp_matrix(w, w * sf))
    return y


if __name__ == "__main__":
    N, CIN, COUT, D, H, W = 2, 4, 3, 8, 8, 8
    key = jax.random.PRNGKey(0)
    k1, k2, k3 = jax.random.split(key, 3)
    x = jax.random.normal(k1, (N, CIN, D, H, W), jnp.float32)
    conv_w = jax.random.normal(k2, (COUT, CIN, 1, 1, 1), jnp.float32) * 0.1
    conv_b = jax.random.normal(k3, (COUT,), jnp.float32) * 0.1

    fwd = jax.jit(fcn_upsampling_forward, static_argnames=("scale_factor",))
    out = jax.block_until_ready(fwd(x, conv_w, conv_b))

    ref = reference_forward(x, conv_w, conv_b)
    assert out.shape == (N, COUT, 2 * D, 2 * H, 2 * W), out.shape
    assert jnp.allclose(out, ref, atol=1e-4, rtol=1e-4), float(
        jnp.max(jnp.abs(out - ref))
    )
    print("KERNEL_OK")
</pallas_src>

<mosaic_0001>
module attributes {stable_mosaic.version = 11 : i64} {
  func.func private @main(%arg0: i32) attributes {dimension_semantics = [#tpu.dimension_semantics<core_parallel>], iteration_bounds = array<i64: 2>, tpu.core_type = #tpu.core_type<sc_scalar_subcore>, window_params = []} {
    return
  }
}

module attributes {stable_mosaic.version = 11 : i64} {
  func.func private @main(%arg0: i32) attributes {dimension_semantics = [#tpu.dimension_semantics<core_parallel>], iteration_bounds = array<i64: 2>, tpu.core_type = #tpu.core_type<sc_scalar_subcore>, window_params = []} {
    return
  }
}

module attributes {stable_mosaic.version = 11 : i64} {
  func.func @_fused_kernel(%arg0: i32, %arg1: memref<64x64xf32, #tpu.memory_space<vmem>>, %arg2: memref<96x64xf32, #tpu.memory_space<vmem>>, %arg3: memref<96x1xf32, #tpu.memory_space<vmem>>, %arg4: memref<64x256xf32, #tpu.memory_space<vmem>>, %arg5: memref<96x256xf32, #tpu.memory_space<vmem>>) attributes {dimension_semantics = [#tpu.dimension_semantics<parallel>], iteration_bounds = array<i64: 1>, scalar_prefetch = 0 : i64, scratch_operands = 0 : i64, tpu.core_type = #tpu.core_type<tc>, window_params = [{pipeline_mode = #tpu.pipeline_mode<synchronous>, transform_indices = @transform_0, window_bounds = array<i64: 64, 64>}, {pipeline_mode = #tpu.pipeline_mode<synchronous>, transform_indices = @transform_1, window_bounds = array<i64: 96, 64>}, {pipeline_mode = #tpu.pipeline_mode<synchronous>, transform_indices = @transform_2, window_bounds = array<i64: 96, 1>}, {transform_indices = @transform_3, window_bounds = array<i64: 64, 256>}, {transform_indices = @transform_4, window_bounds = array<i64: 96, 256>}]} {
    %c0 = arith.constant 0 : index
    %c0_0 = arith.constant 0 : index
    %0 = vector.load %arg1[%c0, %c0_0] : memref<64x64xf32, #tpu.memory_space<vmem>>, vector<64x64xf32>
    %c0_1 = arith.constant 0 : index
    %c0_2 = arith.constant 0 : index
    %1 = vector.load %arg4[%c0_1, %c0_2] : memref<64x256xf32, #tpu.memory_space<vmem>>, vector<64x256xf32>
    %cst = arith.constant dense<0.000000e+00> : vector<64x256xf32>
    %2 = tpu.matmul %0, %1, %cst {dimension_numbers = #tpu.dot_dimension_numbers<[1], [0], [0], [1], [0, 0, 1, 1], [], []>} : vector<64x64xf32>, vector<64x256xf32>, vector<64x256xf32> -> vector<64x256xf32>
    %c0_3 = arith.constant 0 : index
    %c0_4 = arith.constant 0 : index
    %3 = vector.load %arg2[%c0_3, %c0_4] : memref<96x64xf32, #tpu.memory_space<vmem>>, vector<96x64xf32>
    %cst_5 = arith.constant dense<0.000000e+00> : vector<96x256xf32>
    %4 = tpu.matmul %3, %2, %cst_5 {dimension_numbers = #tpu.dot_dimension_numbers<[1], [0], [0], [1], [0, 0, 1, 1], [], []>} : vector<96x64xf32>, vector<64x256xf32>, vector<96x256xf32> -> vector<96x256xf32>
    %c0_6 = arith.constant 0 : index
    %c0_7 = arith.constant 0 : index
    %5 = vector.load %arg3[%c0_6, %c0_7] : memref<96x1xf32, #tpu.memory_space<vmem>>, vector<96x1xf32>
    %6 = vector.broadcast %5 : vector<96x1xf32> to vector<96x256xf32>
    %7 = arith.addf %4, %6 : vector<96x256xf32>
    %c0_8 = arith.constant 0 : index
    %c0_9 = arith.constant 0 : index
    %8 = vector.load %arg5[%c0_8, %c0_9] : memref<96x256xf32, #tpu.memory_space<vmem>>, vector<96x256xf32>
    tpu.vector_store %arg5[%c0_8, %c0_9], %7 {strides = array<i32>} : memref<96x256xf32, #tpu.memory_space<vmem>>, vector<96x256xf32>,
    return
  }
  func.func @transform_0(%arg0: i32) -> (i32, i32) {
    %c0_i32 = arith.constant 0 : i32
    %c0_i32_0 = arith.constant 0 : i32
    %c0_i32_1 = arith.constant 0 : i32
    return %c0_i32, %c0_i32_0 : i32, i32
  }
  func.func @transform_1(%arg0: i32) -> (i32, i32) {
    %c0_i32 = arith.constant 0 : i32
    %c0_i32_0 = arith.constant 0 : i32
    %c0_i32_1 = arith.constant 0 : i32
    return %c0_i32, %c0_i32_0 : i32, i32
  }
  func.func @transform_2(%arg0: i32) -> (i32, i32) {
    %c0_i32 = arith.constant 0 : i32
    %c0_i32_0 = arith.constant 0 : i32
    %c0_i32_1 = arith.constant 0 : i32
    return %c0_i32, %c0_i32_0 : i32, i32
  }
  func.func @transform_3(%arg0: i32) -> (i32, i32) {
    %c0_i32 = arith.constant 0 : i32
    %c0_i32_0 = arith.constant 0 : i32
    return %c0_i32, %arg0 : i32, i32
  }
  func.func @transform_4(%arg0: i32) -> (i32, i32) {
    %c0_i32 = arith.constant 0 : i32
    %c0_i32_0 = arith.constant 0 : i32
    return %c0_i32, %arg0 : i32, i32
  }
}

</mosaic_0001>

<llo_original>
// kernel: tile.6
$region0: #{tile.6}
  #allocation0 [shape = 's32[1]{0}', space=sflag, size = 0x4, scoped, tag = 'scoped memory for tile.6']
  %s0 = inlined_call_operand.vmem [shape: f32[48], index: 0, kind: input, shape index: {}]
  %s1 = inlined_call_operand.vmem [shape: f32[2,48], index: 1, kind: output, shape index: {}]
  // Predicated region
  $region2: #{tile.6} parent=0 // pred_check
    _
  $region3: #{tile.6} parent=0 // pred_check_branch
    %3 = sbr.rel (0) target = $region5
  $region4: #{tile.6} parent=0 // pred_region
    _
  $region5: #{tile.6} parent=0 // pred_fallthru
    _
  %v4 = vld [vmem:[%s0] ss:$0 sm:$0xff]
  %5 = vst [vmem:[%s1] sm:$0x3] %v4

// kernel: tile.5
$region0: #{tile.5}
  %s0 = inlined_call_operand.vmem [shape: f32[3,16], index: 0, kind: input, shape index: {}]
  %s1 = inlined_call_operand.vmem [shape: f32[48], index: 1, kind: output, shape index: {}]
  $region1: #{tile.5} parent=0
    #allocation0 [shape = 'u8[4096]{0}', space=vmem, size = 0x1000, scoped, tag = 'scoped mem for output reshape']
    #allocation1 [shape = 'u8[4096]{0}', space=vmem, size = 0x1000, scoped, tag = 'scoped mem for input reshape']
    %s3 = sshllo.u32 0, 4
    %v4 = vld [vmem:[%s0] sm:%s3]
    %5 = vst [vmem:[#allocation1] sm:%s3] %v4
    %v6 = vld [vmem:[#allocation1] sm:$0x1]
    %vm7 = vcmask 130048
    %8 = vst.msk [vmem:[#allocation0] sm:$0x1] %vm7, %v6
    %s9 = scalar_lea.vmem [#allocation1], 2
    %v10 = vld [vmem:[%s9] sm:$0x1]
    %11 = vrot.lane.b32.xlu0 %v10, 32
    %v12 = vpop.permute.xlu0 %11
    %vm13 = vcmask 392448
    %14 = vst.msk [vmem:[#allocation0] sm:$0x1] %vm13, %v12
    %s15 = scalar_lea.vmem [#allocation1], 1
    %v16 = vld [vmem:[%s15] sm:$0x1]
    %17 = vrot.lane.b32.xlu0 %v16, 16
    %v18 = vpop.permute.xlu0 %17
    %vm19 = vcmask 261248
    %20 = vst.msk [vmem:[#allocation0] sm:$0x1] %vm19, %v18
    %s22 = sshllo.u32 0, 1
    %v24 = vld [vmem:[#allocation0] sm:%s22]
    %s25 = sshllo.u32 0, 1
    %26 = vst [vmem:[%s1] sm:%s25] %v24

// kernel: tile.0
$region0: #{tile.0}
  %s0 = inlined_call_operand.vmem [shape: f32[2,48], index: 0, kind: input, shape index: {}]
  %s1 = inlined_call_operand.vmem [shape: f32[96,1], index: 1, kind: output, shape index: {}]
  $region1: #{tile.0} parent=0
    #allocation0 [shape = 'u8[4096]{0}', space=vmem, size = 0x1000, scoped, tag = 'scoped mem for input reshape']
    %s3 = sshllo.u32 0, 2
    %v4 = vld [vmem:[%s0] sm:%s3]
    %5 = vst [vmem:[#allocation0] sm:%s3] %v4
    %v6 = vld [vmem:[#allocation0] sm:$0x3]
    %vm7 = vcmask 7168
    %8 = vst.msk [vmem:[%s1] ss:$48 sm:$0x3] %vm7, %v6
    %v9 = vld [vmem:[#allocation0] sm:$0x3]
    %10 = vrot.lane.b32.xlu0 %v9, 127
    %v11 = vpop.permute.xlu0 %10
    %vm12 = vcmask 7168
    %s13 = scalar_lea.vmem %s1, 1
    %14 = vst.msk [vmem:[%s13] ss:$48 sm:$0x3] %vm12, %v11
    %v15 = vld [vmem:[#allocation0] sm:$0x3]
    %16 = vrot.lane.b32.xlu0 %v15, 126
    %v17 = vpop.permute.xlu0 %16
    %vm18 = vcmask 7168
    %s19 = scalar_lea.vmem %s1, 2
    %20 = vst.msk [vmem:[%s19] ss:$48 sm:$0x3] %vm18, %v17
    %v21 = vld [vmem:[#allocation0] sm:$0x3]
    %22 = vrot.lane.b32.xlu0 %v21, 125
    %v23 = vpop.permute.xlu0 %22
    %vm24 = vcmask 7168
    %s25 = scalar_lea.vmem %s1, 3
    %26 = vst.msk [vmem:[%s25] ss:$48 sm:$0x3] %vm24, %v23
    %v27 = vld [vmem:[#allocation0] sm:$0x3]
    %28 = vrot.lane.b32.xlu0 %v27, 124
    %v29 = vpop.permute.xlu0 %28
    %vm30 = vcmask 7168
    %s31 = scalar_lea.vmem %s1, 4
    %32 = vst.msk [vmem:[%s31] ss:$48 sm:$0x3] %vm30, %v29
    %v33 = vld [vmem:[#allocation0] sm:$0x3]
    %34 = vrot.lane.b32.xlu0 %v33, 123
    %v35 = vpop.permute.xlu0 %34
    %vm36 = vcmask 7168
    %s37 = scalar_lea.vmem %s1, 5
    %38 = vst.msk [vmem:[%s37] ss:$48 sm:$0x3] %vm36, %v35
    %v39 = vld [vmem:[#allocation0] sm:$0x3]
    %40 = vrot.lane.b32.xlu0 %v39, 122
    %v41 = vpop.permute.xlu0 %40
    %vm42 = vcmask 7168
    %s43 = scalar_lea.vmem %s1, 6
    %44 = vst.msk [vmem:[%s43] ss:$48 sm:$0x3] %vm42, %v41
    %v45 = vld [vmem:[#allocation0] sm:$0x3]
    %46 = vrot.lane.b32.xlu0 %v45, 121
    %v47 = vpop.permute.xlu0 %46
    %vm48 = vcmask 7168
    %s49 = scalar_lea.vmem %s1, 7
    %50 = vst.msk [vmem:[%s49] ss:$48 sm:$0x3] %vm48, %v47
    %v51 = vld [vmem:[#allocation0] sm:$0x3]
    %52 = vrot.lane.b32.xlu0 %v51, 120
    %v53 = vpop.permute.xlu0 %52
    %vm54 = vcmask 7168
    %s55 = scalar_lea.vmem %s1, 8
    %56 = vst.msk [vmem:[%s55] ss:$48 sm:$0x3] %vm54, %v53
    %v57 = vld [vmem:[#allocation0] sm:$0x3]
    %58 = vrot.lane.b32.xlu0 %v57, 119
    %v59 = vpop.permute.xlu0 %58
    %vm60 = vcmask 7168
    %s61 = scalar_lea.vmem %s1, 9
    %62 = vst.msk [vmem:[%s61] ss:$48 sm:$0x3] %vm60, %v59
    %v63 = vld [vmem:[#allocation0] sm:$0x3]
    %64 = vrot.lane.b32.xlu0 %v63, 118
    %v65 = vpop.permute.xlu0 %64
    %vm66 = vcmask 7168
    %s67 = scalar_lea.vmem %s1, 10
    %68 = vst.msk [vmem:[%s67] ss:$48 sm:$0x3] %vm66, %v65
    %v69 = vld [vmem:[#allocation0] sm:$0x3]
    %70 = vrot.lane.b32.xlu0 %v69, 117
    %v71 = vpop.permute.xlu0 %70
    %vm72 = vcmask 7168
    %s73 = scalar_lea.vmem %s1, 11
    %74 = vst.msk [vmem:[%s73] ss:$48 sm:$0x3] %vm72, %v71
    %v75 = vld [vmem:[#allocation0] sm:$0x3]
    %76 = vrot.lane.b32.xlu0 %v75, 116
    %v77 = vpop.permute.xlu0 %76
    %vm78 = vcmask 7168
    %s79 = scalar_lea.vmem %s1, 12
    %80 = vst.msk [vmem:[%s79] ss:$48 sm:$0x3] %vm78, %v77
    %v81 = vld [vmem:[#allocation0] sm:$0x3]
    %82 = vrot.lane.b32.xlu0 %v81, 115
    %v83 = vpop.permute.xlu0 %82
    %vm84 = vcmask 7168
    %s85 = scalar_lea.vmem %s1, 13
    %86 = vst.msk [vmem:[%s85] ss:$48 sm:$0x3] %vm84, %v83
    %v87 = vld [vmem:[#allocation0] sm:$0x3]
    %88 = vrot.lane.b32.xlu0 %v87, 114
    %v89 = vpop.permute.xlu0 %88
    %vm90 = vcmask 7168
    %s91 = scalar_lea.vmem %s1, 14
    %92 = vst.msk [vmem:[%s91] ss:$48 sm:$0x3] %vm90, %v89
    %v93 = vld [vmem:[#allocation0] sm:$0x3]
    %94 = vrot.lane.b32.xlu0 %v93, 113
    %v95 = vpop.permute.xlu0 %94
    %vm96 = vcmask 7168
    %s97 = scalar_lea.vmem %s1, 15
    %98 = vst.msk [vmem:[%s97] ss:$48 sm:$0x3] %vm96, %v95
    %s99 = scalar_lea.vmem [#allocation0], 1
    %s100 = smov 3
    %v101 = vld [vmem:[%s99] ss:$-1 sm:%s100]
    %102 = vrot.lane.b32.xlu0 %v101, 112
    %v103 = vpop.permute.xlu0 %102
    %vm104 = vcmask 7168
    %s105 = scalar_lea.vmem %s1, 64
    %106 = vst.msk [vmem:[%s105] ss:$-48 sm:$0x3] %vm104, %v103
    %s107 = scalar_lea.vmem [#allocation0], 1
    %s108 = smov 3
    %v109 = vld [vmem:[%s107] ss:$-1 sm:%s108]
    %110 = vrot.lane.b32.xlu0 %v109, 111
    %v111 = vpop.permute.xlu0 %110
    %vm112 = vcmask 7168
    %s113 = scalar_lea.vmem %s1, 65
    %114 = vst.msk [vmem:[%s113] ss:$-48 sm:$0x3] %vm112, %v111
    %s115 = scalar_lea.vmem [#allocation0], 1
    %s116 = smov 3
    %v117 = vld [vmem:[%s115] ss:$-1 sm:%s116]
    %118 = vrot.lane.b32.xlu0 %v117, 110
    %v119 = vpop.permute.xlu0 %118
    %vm120 = vcmask 7168
    %s121 = scalar_lea.vmem %s1, 66
    %122 = vst.msk [vmem:[%s121] ss:$-48 sm:$0x3] %vm120, %v119
    %s123 = scalar_lea.vmem [#allocation0], 1
    %s124 = smov 3
    %v125 = vld [vmem:[%s123] ss:$-1 sm:%s124]
    %126 = vrot.lane.b32.xlu0 %v125, 109
    %v127 = vpop.permute.xlu0 %126
    %vm128 = vcmask 7168
    %s129 = scalar_lea.vmem %s1, 67
    %130 = vst.msk [vmem:[%s129] ss:$-48 sm:$0x3] %vm128, %v127
    %s131 = scalar_lea.vmem [#allocation0], 1
    %s132 = smov 3
    %v133 = vld [vmem:[%s131] ss:$-1 sm:%s132]
    %134 = vrot.lane.b32.xlu0 %v133, 108
    %v135 = vpop.permute.xlu0 %134
    %vm136 = vcmask 7168
    %s137 = scalar_lea.vmem %s1, 68
    %138 = vst.msk [vmem:[%s137] ss:$-48 sm:$0x3] %vm136, %v135
    %s139 = scalar_lea.vmem [#allocation0], 1
    %s140 = smov 3
    %v141 = vld [vmem:[%s139] ss:$-1 sm:%s140]
    %142 = vrot.lane.b32.xlu0 %v141, 107
    %v143 = vpop.permute.xlu0 %142
    %vm144 = vcmask 7168
    %s145 = scalar_lea.vmem %s1, 69
    %146 = vst.msk [vmem:[%s145] ss:$-48 sm:$0x3] %vm144, %v143
    %s147 = scalar_lea.vmem [#allocation0], 1
    %s148 = smov 3
    %v149 = vld [vmem:[%s147] ss:$-1 sm:%s148]
    %150 = vrot.lane.b32.xlu0 %v149, 106
    %v151 = vpop.permute.xlu0 %150
    %vm152 = vcmask 7168
    %s153 = scalar_lea.vmem %s1, 70
    %154 = vst.msk [vmem:[%s153] ss:$-48 sm:$0x3] %vm152, %v151
    %s155 = scalar_lea.vmem [#allocation0], 1
    %s156 = smov 3
    %v157 = vld [vmem:[%s155] ss:$-1 sm:%s156]
    %158 = vrot.lane.b32.xlu0 %v157, 105
    %v159 = vpop.permute.xlu0 %158
    %vm160 = vcmask 7168
    %s161 = scalar_lea.vmem %s1, 71
    %162 = vst.msk [vmem:[%s161] ss:$-48 sm:$0x3] %vm160, %v159
    %s163 = scalar_lea.vmem [#allocation0], 1
    %s164 = smov 3
    %v165 = vld [vmem:[%s163] ss:$-1 sm:%s164]
    %166 = vrot.lane.b32.xlu0 %v165, 104
    %v167 = vpop.permute.xlu0 %166
    %vm168 = vcmask 7168
    %s169 = scalar_lea.vmem %s1, 72
    %170 = vst.msk [vmem:[%s169] ss:$-48 sm:$0x3] %vm168, %v167
    %s171 = scalar_lea.vmem [#allocation0], 1
    %s172 = smov 3
    %v173 = vld [vmem:[%s171] ss:$-1 sm:%s172]
    %174 = vrot.lane.b32.xlu0 %v173, 103
    %v175 = vpop.permute.xlu0 %174
    %vm176 = vcmask 7168
    %s177 = scalar_lea.vmem %s1, 73
    %178 = vst.msk [vmem:[%s177] ss:$-48 sm:$0x3] %vm176, %v175
    %s179 = scalar_lea.vmem [#allocation0], 1
    %s180 = smov 3
    %v181 = vld [vmem:[%s179] ss:$-1 sm:%s180]
    %182 = vrot.lane.b32.xlu0 %v181, 102
    %v183 = vpop.permute.xlu0 %182
    %vm184 = vcmask 7168
    %s185 = scalar_lea.vmem %s1, 74
    %186 = vst.msk [vmem:[%s185] ss:$-48 sm:$0x3] %vm184, %v183
    %s187 = scalar_lea.vmem [#allocation0], 1
    %s188 = smov 3
    %v189 = vld [vmem:[%s187] ss:$-1 sm:%s188]
    %190 = vrot.lane.b32.xlu0 %v189, 101
    %v191 = vpop.permute.xlu0 %190
    %vm192 = vcmask 7168
    %s193 = scalar_lea.vmem %s1, 75
    %194 = vst.msk [vmem:[%s193] ss:$-48 sm:$0x3] %vm192, %v191
    %s195 = scalar_lea.vmem [#allocation0], 1
    %s196 = smov 3
    %v197 = vld [vmem:[%s195] ss:$-1 sm:%s196]
    %198 = vrot.lane.b32.xlu0 %v197, 100
    %v199 = vpop.permute.xlu0 %198
    %vm200 = vcmask 7168
    %s201 = scalar_lea.vmem %s1, 76
    %202 = vst.msk [vmem:[%s201] ss:$-48 sm:$0x3] %vm200, %v199
    %s203 = scalar_lea.vmem [#allocation0], 1
    %s204 = smov 3
    %v205 = vld [vmem:[%s203] ss:$-1 sm:%s204]
    %206 = vrot.lane.b32.xlu0 %v205, 99
    %v207 = vpop.permute.xlu0 %206
    %vm208 = vcmask 7168
    %s209 = scalar_lea.vmem %s1, 77
    %210 = vst.msk [vmem:[%s209] ss:$-48 sm:$0x3] %vm208, %v207
    %s211 = scalar_lea.vmem [#allocation0], 1
    %s212 = smov 3
    %v213 = vld [vmem:[%s211] ss:$-1 sm:%s212]
    %214 = vrot.lane.b32.xlu0 %v213, 98
    %v215 = vpop.permute.xlu0 %214
    %vm216 = vcmask 7168
    %s217 = scalar_lea.vmem %s1, 78
    %218 = vst.msk [vmem:[%s217] ss:$-48 sm:$0x3] %vm216, %v215
    %s219 = scalar_lea.vmem [#allocation0], 1
    %s220 = smov 3
    %v221 = vld [vmem:[%s219] ss:$-1 sm:%s220]
    %222 = vrot.lane.b32.xlu0 %v221, 97
    %v223 = vpop.permute.xlu0 %222
    %vm224 = vcmask 7168
    %s225 = scalar_lea.vmem %s1, 79
    %226 = vst.msk [vmem:[%s225] ss:$-48 sm:$0x3] %vm224, %v223
    %v227 = vld [vmem:[#allocation0] sm:$0x3]
    %228 = vrot.lane.b32.xlu0 %v227, 96
    %v229 = vpop.permute.xlu0 %228
    %vm230 = vcmask 7168
    %s231 = scalar_lea.vmem %s1, 32
    %232 = vst.msk [vmem:[%s231] ss:$48 sm:$0x3] %vm230, %v229
    %v233 = vld [vmem:[#allocation0] sm:$0x3]
    %234 = vrot.lane.b32.xlu0 %v233, 95
    %v235 = vpop.permute.xlu0 %234
    %vm236 = vcmask 7168
    %s237 = scalar_lea.vmem %s1, 33
    %238 = vst.msk [vmem:[%s237] ss:$48 sm:$0x3] %vm236, %v235
    %v239 = vld [vmem:[#allocation0] sm:$0x3]
    %240 = vrot.lane.b32.xlu0 %v239, 94
    %v241 = vpop.permute.xlu0 %240
    %vm242 = vcmask 7168
    %s243 = scalar_lea.vmem %s1, 34
    %244 = vst.msk [vmem:[%s243] ss:$48 sm:$0x3] %vm242, %v241
    %v245 = vld [vmem:[#allocation0] sm:$0x3]
    %246 = vrot.lane.b32.xlu0 %v245, 93
    %v247 = vpop.permute.xlu0 %246
    %vm248 = vcmask 7168
    %s249 = scalar_lea.vmem %s1, 35
    %250 = vst.msk [vmem:[%s249] ss:$48 sm:$0x3] %vm248, %v247
    %v251 = vld [vmem:[#allocation0] sm:$0x3]
    %252 = vrot.lane.b32.xlu0 %v251, 92
    %v253 = vpop.permute.xlu0 %252
    %vm254 = vcmask 7168
    %s255 = scalar_lea.vmem %s1, 36
    %256 = vst.msk [vmem:[%s255] ss:$48 sm:$0x3] %vm254, %v253
    %v257 = vld [vmem:[#allocation0] sm:$0x3]
    %258 = vrot.lane.b32.xlu0 %v257, 91
    %v259 = vpop.permute.xlu0 %258
    %vm260 = vcmask 7168
    %s261 = scalar_lea.vmem %s1, 37
    %262 = vst.msk [vmem:[%s261] ss:$48 sm:$0x3] %vm260, %v259
    %v263 = vld [vmem:[#allocation0] sm:$0x3]
    %264 = vrot.lane.b32.xlu0 %v263, 90
    %v265 = vpop.permute.xlu0 %264
    %vm266 = vcmask 7168
    %s267 = scalar_lea.vmem %s1, 38
    %268 = vst.msk [vmem:[%s267] ss:$48 sm:$0x3] %vm266, %v265
    %v269 = vld [vmem:[#allocation0] sm:$0x3]
    %270 = vrot.lane.b32.xlu0 %v269, 89
    %v271 = vpop.permute.xlu0 %270
    %vm272 = vcmask 7168
    %s273 = scalar_lea.vmem %s1, 39
    %274 = vst.msk [vmem:[%s273] ss:$48 sm:$0x3] %vm272, %v271
    %v275 = vld [vmem:[#allocation0] sm:$0x3]
    %276 = vrot.lane.b32.xlu0 %v275, 88
    %v277 = vpop.permute.xlu0 %276
    %vm278 = vcmask 7168
    %s279 = scalar_lea.vmem %s1, 40
    %280 = vst.msk [vmem:[%s279] ss:$48 sm:$0x3] %vm278, %v277
    %v281 = vld [vmem:[#allocation0] sm:$0x3]
    %282 = vrot.lane.b32.xlu0 %v281, 87
    %v283 = vpop.permute.xlu0 %282
    %vm284 = vcmask 7168
    %s285 = scalar_lea.vmem %s1, 41
    %286 = vst.msk [vmem:[%s285] ss:$48 sm:$0x3] %vm284, %v283
    %v287 = vld [vmem:[#allocation0] sm:$0x3]
    %288 = vrot.lane.b32.xlu0 %v287, 86
    %v289 = vpop.permute.xlu0 %288
    %vm290 = vcmask 7168
    %s291 = scalar_lea.vmem %s1, 42
    %292 = vst.msk [vmem:[%s291] ss:$48 sm:$0x3] %vm290, %v289
    %v293 = vld [vmem:[#allocation0] sm:$0x3]
    %294 = vrot.lane.b32.xlu0 %v293, 85
    %v295 = vpop.permute.xlu0 %294
    %vm296 = vcmask 7168
    %s297 = scalar_lea.vmem %s1, 43
    %298 = vst.msk [vmem:[%s297] ss:$48 sm:$0x3] %vm296, %v295
    %v299 = vld [vmem:[#allocation0] sm:$0x3]
    %300 = vrot.lane.b32.xlu0 %v299, 84
    %v301 = vpop.permute.xlu0 %300
    %vm302 = vcmask 7168
    %s303 = scalar_lea.vmem %s1, 44
    %304 = vst.msk [vmem:[%s303] ss:$48 sm:$0x3] %vm302, %v301
    %v305 = vld [vmem:[#allocation0] sm:$0x3]
    %306 = vrot.lane.b32.xlu0 %v305, 83
    %v307 = vpop.permute.xlu0 %306
    %vm308 = vcmask 7168
    %s309 = scalar_lea.vmem %s1, 45
    %310 = vst.msk [vmem:[%s309] ss:$48 sm:$0x3] %vm308, %v307
    %v311 = vld [vmem:[#allocation0] sm:$0x3]
    %312 = vrot.lane.b32.xlu0 %v311, 82
    %v313 = vpop.permute.xlu0 %312
    %vm314 = vcmask 7168
    %s315 = scalar_lea.vmem %s1, 46
    %316 = vst.msk [vmem:[%s315] ss:$48 sm:$0x3] %vm314, %v313
    %v317 = vld [vmem:[#allocation0] sm:$0x3]
    %318 = vrot.lane.b32.xlu0 %v317, 81
    %v319 = vpop.permute.xlu0 %318
    %vm320 = vcmask 7168
    %s321 = scalar_lea.vmem %s1, 47
    %322 = vst.msk [vmem:[%s321] ss:$48 sm:$0x3] %vm320, %v319

// kernel: fcn_upsampling_forward.1
$region0: #{fcn_upsampling_forward.1}
  #allocation0 [shape = 'u32[]', space=smem, size = 0x4, offset = 0x4, fixed_abs, tag = 'smem constant byte address 0x4 - core index']
  #allocation1 [shape = 'u32[144,128]{1,0:T(1,128)}', space=vmem, size = 0x12000, scoped, tag = 'internal scratch']
  %s0 = inlined_call_operand.vmem [shape: f32[64,64], index: 0, kind: input, shape index: {}]
  %s1 = inlined_call_operand.vmem [shape: f32[96,64], index: 1, kind: input, shape index: {}]
  %s2 = inlined_call_operand.vmem [shape: f32[96,1], index: 2, kind: input, shape index: {}]
  %s3 = inlined_call_operand.vmem [shape: f32[64,256], index: 3, kind: input, shape index: {}]
  %s4 = inlined_call_operand.vmem [shape: f32[96,256], index: 4, kind: output, shape index: {}]
  %s5 = sld [smem:[#allocation0]]
  $region26: #{fcn_upsampling_forward.1} parent=0
    _
  %s7 = ssub.s32 1, %s5
  %s8 = scalar_select 0, %s7, %s5
  // Predicated region
  $region2: #{fcn_upsampling_forward.1} parent=0 // pred_check
    _
  $region3: #{fcn_upsampling_forward.1} parent=0 // pred_check_branch
    %10 = sbr.rel (0) target = $region5
  $region4: #{fcn_upsampling_forward.1} parent=0 // pred_region
    _
  $region5: #{fcn_upsampling_forward.1} parent=0 // pred_fallthru
    _
  // Predicated region
  $region6: #{fcn_upsampling_forward.1} parent=0 // pred_check
    _
  $region7: #{fcn_upsampling_forward.1} parent=0 // pred_check_branch
    %12 = sbr.rel (0) target = $region9
  $region8: #{fcn_upsampling_forward.1} parent=0 // pred_region
    _
  $region9: #{fcn_upsampling_forward.1} parent=0 // pred_fallthru
    _
  // Predicated region
  $region10: #{fcn_upsampling_forward.1} parent=0 // pred_check
    _
  $region11: #{fcn_upsampling_forward.1} parent=0 // pred_check_branch
    %14 = sbr.rel (0) target = $region13
  $region12: #{fcn_upsampling_forward.1} parent=0 // pred_region
    _
  $region13: #{fcn_upsampling_forward.1} parent=0 // pred_fallthru
    _
  // Predicated region
  $region14: #{fcn_upsampling_forward.1} parent=0 // pred_check
    _
  $region15: #{fcn_upsampling_forward.1} parent=0 // pred_check_branch
    %16 = sbr.rel (0) target = $region17
  $region16: #{fcn_upsampling_forward.1} parent=0 // pred_region
    _
  $region17: #{fcn_upsampling_forward.1} parent=0 // pred_fallthru
    _
  %v17 = vld [vmem:[%s0] sm:$0xff]
  %v18 = vld [vmem:[%s0 + $0x8] sm:$0xff]
  %v19 = vld [vmem:[%s0 + $0x10] sm:$0xff]
  %v20 = vld [vmem:[%s0 + $0x18] sm:$0xff]
  %v21 = vld [vmem:[%s0 + $0x20] sm:$0xff]
  %v22 = vld [vmem:[%s0 + $0x28] sm:$0xff]
  %v23 = vld [vmem:[%s0 + $0x30] sm:$0xff]
  %v24 = vld [vmem:[%s0 + $0x38] sm:$0xff]
  %v25 = vld [vmem:[%s3] sm:$0xff]
  %v26 = vld [vmem:[%s3 + $0x8] sm:$0xff]
  %v27 = vld [vmem:[%s3 + $0x10] sm:$0xff]
  %v28 = vld [vmem:[%s3 + $0x18] sm:$0xff]
  %v29 = vld [vmem:[%s3 + $0x20] sm:$0xff]
  %v30 = vld [vmem:[%s3 + $0x28] sm:$0xff]
  %v31 = vld [vmem:[%s3 + $0x30] sm:$0xff]
  %v32 = vld [vmem:[%s3 + $0x38] sm:$0xff]
  %v33 = vld [vmem:[%s3 + $0x40] sm:$0xff]
  %v34 = vld [vmem:[%s3 + $0x48] sm:$0xff]
  %v35 = vld [vmem:[%s3 + $0x50] sm:$0xff]
  %v36 = vld [vmem:[%s3 + $0x58] sm:$0xff]
  %v37 = vld [vmem:[%s3 + $0x60] sm:$0xff]
  %v38 = vld [vmem:[%s3 + $0x68] sm:$0xff]
  %v39 = vld [vmem:[%s3 + $0x70] sm:$0xff]
  %v40 = vld [vmem:[%s3 + $0x78] sm:$0xff]
  %vm41 = vcmask 523264
  %v43 = vsel %vm41, %v17, 0
  %v46 = vsel %vm41, %v18, 0
  %v49 = vsel %vm41, %v19, 0
  %v52 = vsel %vm41, %v20, 0
  %v55 = vsel %vm41, %v21, 0
  %v58 = vsel %vm41, %v22, 0
  %v61 = vsel %vm41, %v23, 0
  %v64 = vsel %vm41, %v24, 0
  %66 = vmatprep.subr.mxu0 %v26
  %67 = vmatpush1.msra.mxu0 %v25
  %68 = vmatprep.subr.mxu0 %v28
  %69 = vmatpush1.msra.mxu0 %v27
  %70 = vmatprep.subr.mxu0 %v30
  %71 = vmatpush1.msra.mxu0 %v29
  %72 = vmatprep.subr.mxu0 %v32
  %73 = vmatpush1.msra.mxu0 %v31
  %74 = vmatprep.subr.mxu0 %v34
  %75 = vmatpush1.msra.mxu0 %v33
  %76 = vmatprep.subr.mxu0 %v36
  %77 = vmatpush1.msra.mxu0 %v35
  %78 = vmatprep.subr.mxu0 %v38
  %79 = vmatpush1.msra.mxu0 %v37
  %80 = vmatprep.subr.mxu0 %v40
  %81 = vmatpush1.msra.mxu0 %v39
  %82 = vmatprep.subr.mxu0 0.0
  %83 = vmatpush1.msra.mxu0 0.0
  %84 = vmatprep.subr.mxu0 0.0
  %85 = vmatpush1.msra.mxu0 0.0
  %86 = vmatprep.subr.mxu0 0.0
  %87 = vmatpush1.msra.mxu0 0.0
  %88 = vmatprep.subr.mxu0 0.0
  %89 = vmatpush1.msra.mxu0 0.0
  %90 = vmatprep.subr.mxu0 0.0
  %91 = vmatpush1.msra.mxu0 0.0
  %92 = vmatprep.subr.mxu0 0.0
  %93 = vmatpush1.msra.mxu0 0.0
  %94 = vmatprep.subr.mxu0 0.0
  %95 = vmatpush1.msra.mxu0 0.0
  %96 = vmatprep.subr.mxu0 0.0
  %97 = vmatpush1.msra.mxu0 0.0
  %98 = vmatprep.subr.mxu0 0.0
  %99 = vmatpush1.msra.mxu0 0.0
  %100 = vmatprep.subr.mxu0 0.0
  %101 = vmatpush1.msra.mxu0 0.0
  %102 = vmatprep.subr.mxu0 0.0
  %103 = vmatpush1.msra.mxu0 0.0
  %104 = vmatprep.subr.mxu0 0.0
  %105 = vmatpush1.msra.mxu0 0.0
  %106 = vmatprep.subr.mxu0 0.0
  %107 = vmatpush1.msra.mxu0 0.0
  %108 = vmatprep.subr.mxu0 0.0
  %109 = vmatpush1.msra.mxu0 0.0
  %110 = vmatprep.subr.mxu0 0.0
  %111 = vmatpush1.msra.mxu0 0.0
  %112 = vmatprep.subr.mxu0 0.0
  %113 = vmatpush1.msra.mxu0 0.0
  %114 = vmatprep.subr.mxu0 0.0
  %115 = vmatpush1.msra.mxu0 0.0
  %116 = vmatprep.subr.mxu0 0.0
  %117 = vmatpush1.msra.mxu0 0.0
  %118 = vmatprep.subr.mxu0 0.0
  %119 = vmatpush1.msra.mxu0 0.0
  %120 = vmatprep.subr.mxu0 0.0
  %121 = vmatpush1.msra.mxu0 0.0
  %122 = vmatprep.subr.mxu0 0.0
  %123 = vmatpush1.msra.mxu0 0.0
  %124 = vmatprep.subr.mxu0 0.0
  %125 = vmatpush1.msra.mxu0 0.0
  %126 = vmatprep.subr.mxu0 0.0
  %127 = vmatpush1.msra.mxu0 0.0
  %128 = vmatprep.subr.mxu0 0.0
  %129 = vmatpush1.msra.mxu0 0.0
  %130 = vmatprep.mubr.f32.mxu0 0.0
  %131 = vmatmul.mubr.f32.gmra.mrb[0].mxu0 %v43
  %v132 = vpop.f32.mrb[0].mxu0
  %v133 = vadd.f32 0.0, %v132
  %v134 = vpop.f32.mrb[0].mxu0
  %v135 = vadd.f32 0.0, %v134
  %136 = vmatprep.mubr.f32.mxu0 0.0
  %137 = vmatmul.mubr.f32.gmra.mrb[0].mxu0 %v46
  %v138 = vpop.f32.mrb[0].mxu0
  %v139 = vadd.f32 0.0, %v138
  %v140 = vpop.f32.mrb[0].mxu0
  %v141 = vadd.f32 0.0, %v140
  %142 = vmatprep.mubr.f32.mxu0 0.0
  %143 = vmatmul.mubr.f32.gmra.mrb[0].mxu0 %v49
  %v144 = vpop.f32.mrb[0].mxu0
  %v145 = vadd.f32 0.0, %v144
  %v146 = vpop.f32.mrb[0].mxu0
  %v147 = vadd.f32 0.0, %v146
  %148 = vmatprep.mubr.f32.mxu0 0.0
  %149 = vmatmul.mubr.f32.gmra.mrb[0].mxu0 %v52
  %v150 = vpop.f32.mrb[0].mxu0
  %v151 = vadd.f32 0.0, %v150
  %v152 = vpop.f32.mrb[0].mxu0
  %v153 = vadd.f32 0.0, %v152
  %154 = vmatprep.mubr.f32.mxu0 0.0
  %155 = vmatmul.mubr.f32.gmra.mrb[0].mxu0 %v55
  %v156 = vpop.f32.mrb[0].mxu0
  %v157 = vadd.f32 0.0, %v156
  %v158 = vpop.f32.mrb[0].mxu0
  %v159 = vadd.f32 0.0, %v158
  %160 = vmatprep.mubr.f32.mxu0 0.0
  %161 = vmatmul.mubr.f32.gmra.mrb[0].mxu0 %v58
  %v162 = vpop.f32.mrb[0].mxu0
  %v163 = vadd.f32 0.0, %v162
  %v164 = vpop.f32.mrb[0].mxu0
  %v165 = vadd.f32 0.0, %v164
  %166 = vmatprep.mubr.f32.mxu0 0.0
  %167 = vmatmul.mubr.f32.gmra.mrb[0].mxu0 %v61
  %v168 = vpop.f32.mrb[0].mxu0
  %v169 = vadd.f32 0.0, %v168
  %v170 = vpop.f32.mrb[0].mxu0
  %v171 = vadd.f32 0.0, %v170
  %172 = vmatprep.mubr.f32.mxu0 0.0
  %173 = vmatmul.mubr.f32.gmra.mrb[0].mxu0 %v64
  %v174 = vpop.f32.mrb[0].mxu0
  %v175 = vadd.f32 0.0, %v174
  %v176 = vpop.f32.mrb[0].mxu0
  %v177 = vadd.f32 0.0, %v176
  %178 = vdwg.mxu0
  %v179 = vld [vmem:[%s1] sm:$0xff]
  %v180 = vld [vmem:[%s1 + $0x8] sm:$0xff]
  %v181 = vld [vmem:[%s1 + $0x10] sm:$0xff]
  %v182 = vld [vmem:[%s1 + $0x18] sm:$0xff]
  %v183 = vld [vmem:[%s1 + $0x20] sm:$0xff]
  %v184 = vld [vmem:[%s1 + $0x28] sm:$0xff]
  %v185 = vld [vmem:[%s1 + $0x30] sm:$0xff]
  %v186 = vld [vmem:[%s1 + $0x38] sm:$0xff]
  %v187 = vld [vmem:[%s1 + $0x40] sm:$0xff]
  %v188 = vld [vmem:[%s1 + $0x48] sm:$0xff]
  %v189 = vld [vmem:[%s1 + $0x50] sm:$0xff]
  %v190 = vld [vmem:[%s1 + $0x58] sm:$0xff]
  %v191 = vld [vmem:[%s2] sm:$0xff]
  %v192 = vld [vmem:[%s2 + $0x8] sm:$0xff]
  %v193 = vld [vmem:[%s2 + $0x10] sm:$0xff]
  %v194 = vld [vmem:[%s2 + $0x18] sm:$0xff]
  %v195 = vld [vmem:[%s2 + $0x20] sm:$0xff]
  %v196 = vld [vmem:[%s2 + $0x28] sm:$0xff]
  %v197 = vld [vmem:[%s2 + $0x30] sm:$0xff]
  %v198 = vld [vmem:[%s2 + $0x38] sm:$0xff]
  %v199 = vld [vmem:[%s2 + $0x40] sm:$0xff]
  %v200 = vld [vmem:[%s2 + $0x48] sm:$0xff]
  %v201 = vld [vmem:[%s2 + $0x50] sm:$0xff]
  %v202 = vld [vmem:[%s2 + $0x58] sm:$0xff]
  %204 = vset.pattern.permute.xlu0 0
  %205 = vperm.xlu0 %204, %v191
  %v206 = vpop.permute.xlu0 %205
  %209 = vset.pattern.permute.xlu0 0
  %210 = vperm.xlu0 %209, %v192
  %v211 = vpop.permute.xlu0 %210
  %214 = vset.pattern.permute.xlu0 0
  %215 = vperm.xlu0 %214, %v193
  %v216 = vpop.permute.xlu0 %215
  %219 = vset.pattern.permute.xlu0 0
  %220 = vperm.xlu0 %219, %v194
  %v221 = vpop.permute.xlu0 %220
  %224 = vset.pattern.permute.xlu0 0
  %225 = vperm.xlu0 %224, %v195
  %v226 = vpop.permute.xlu0 %225
  %229 = vset.pattern.permute.xlu0 0
  %230 = vperm.xlu0 %229, %v196
  %v231 = vpop.permute.xlu0 %230
  %234 = vset.pattern.permute.xlu0 0
  %235 = vperm.xlu0 %234, %v197
  %v236 = vpop.permute.xlu0 %235
  %239 = vset.pattern.permute.xlu0 0
  %240 = vperm.xlu0 %239, %v198
  %v241 = vpop.permute.xlu0 %240
  %244 = vset.pattern.permute.xlu0 0
  %245 = vperm.xlu0 %244, %v199
  %v246 = vpop.permute.xlu0 %245
  %249 = vset.pattern.permute.xlu0 0
  %250 = vperm.xlu0 %249, %v200
  %v251 = vpop.permute.xlu0 %250
  %254 = vset.pattern.permute.xlu0 0
  %255 = vperm.xlu0 %254, %v201
  %v256 = vpop.permute.xlu0 %255
  %259 = vset.pattern.permute.xlu0 0
  %260 = vperm.xlu0 %259, %v202
  %v261 = vpop.permute.xlu0 %260
  %v264 = vsel %vm41, %v179, 0
  %v267 = vsel %vm41, %v180, 0
  %v270 = vsel %vm41, %v181, 0
  %v273 = vsel %vm41, %v182, 0
  %v276 = vsel %vm41, %v183, 0
  %v279 = vsel %vm41, %v184, 0
  %v282 = vsel %vm41, %v185, 0
  %v285 = vsel %vm41, %v186, 0
  %v288 = vsel %vm41, %v187, 0
  %v291 = vsel %vm41, %v188, 0
  %v294 = vsel %vm41, %v189, 0
  %v297 = vsel %vm41, %v190, 0
  %299 = vmatprep.subr.mxu0 %v135
  %300 = vmatpush1.msra.mxu0 %v133
  %301 = vmatprep.subr.mxu0 %v141
  %302 = vmatpush1.msra.mxu0 %v139
  %303 = vmatprep.subr.mxu0 %v147
  %304 = vmatpush1.msra.mxu0 %v145
  %305 = vmatprep.subr.mxu0 %v153
  %306 = vmatpush1.msra.mxu0 %v151
  %307 = vmatprep.subr.mxu0 %v159
  %308 = vmatpush1.msra.mxu0 %v157
  %309 = vmatprep.subr.mxu0 %v165
  %310 = vmatpush1.msra.mxu0 %v163
  %311 = vmatprep.subr.mxu0 %v171
  %312 = vmatpush1.msra.mxu0 %v169
  %313 = vmatprep.subr.mxu0 %v177
  %314 = vmatpush1.msra.mxu0 %v175
  %315 = vmatprep.subr.mxu0 0.0
  %316 = vmatpush1.msra.mxu0 0.0
  %317 = vmatprep.subr.mxu0 0.0
  %318 = vmatpush1.msra.mxu0 0.0
  %319 = vmatprep.subr.mxu0 0.0
  %320 = vmatpush1.msra.mxu0 0.0
  %321 = vmatprep.subr.mxu0 0.0
  %322 = vmatpush1.msra.mxu0 0.0
  %323 = vmatprep.subr.mxu0 0.0
  %324 = vmatpush1.msra.mxu0 0.0
  %325 = vmatprep.subr.mxu0 0.0
  %326 = vmatpush1.msra.mxu0 0.0
  %327 = vmatprep.subr.mxu0 0.0
  %328 = vmatpush1.msra.mxu0 0.0
  %329 = vmatprep.subr.mxu0 0.0
  %330 = vmatpush1.msra.mxu0 0.0
  %331 = vmatprep.subr.mxu0 0.0
  %332 = vmatpush1.msra.mxu0 0.0
  %333 = vmatprep.subr.mxu0 0.0
  %334 = vmatpush1.msra.mxu0 0.0
  %335 = vmatprep.subr.mxu0 0.0
  %336 = vmatpush1.msra.mxu0 0.0
  %337 = vmatprep.subr.mxu0 0.0
  %338 = vmatpush1.msra.mxu0 0.0
  %339 = vmatprep.subr.mxu0 0.0
  %340 = vmatpush1.msra.mxu0 0.0
  %341 = vmatprep.subr.mxu0 0.0
  %342 = vmatpush1.msra.mxu0 0.0
  %343 = vmatprep.subr.mxu0 0.0
  %344 = vmatpush1.msra.mxu0 0.0
  %345 = vmatprep.subr.mxu0 0.0
  %346 = vmatpush1.msra.mxu0 0.0
  %347 = vmatprep.subr.mxu0 0.0
  %348 = vmatpush1.msra.mxu0 0.0
  %349 = vmatprep.subr.mxu0 0.0
  %350 = vmatpush1.msra.mxu0 0.0
  %351 = vmatprep.subr.mxu0 0.0
  %352 = vmatpush1.msra.mxu0 0.0
  %353 = vmatprep.subr.mxu0 0.0
  %354 = vmatpush1.msra.mxu0 0.0
  %355 = vmatprep.subr.mxu0 0.0
  %356 = vmatpush1.msra.mxu0 0.0
  %357 = vmatprep.subr.mxu0 0.0
  %358 = vmatpush1.msra.mxu0 0.0
  %359 = vmatprep.subr.mxu0 0.0
  %360 = vmatpush1.msra.mxu0 0.0
  %361 = vmatprep.subr.mxu0 0.0
  %362 = vmatpush1.msra.mxu0 0.0
  %363 = vmatprep.mubr.f32.mxu0 0.0
  %364 = vmatmul.mubr.f32.gmra.mrb[0].mxu0 %v264
  %v365 = vpop.f32.mrb[0].mxu0
  %v366 = vadd.f32 %v206, %v365
  %v367 = vpop.f32.mrb[0].mxu0
  %v368 = vadd.f32 %v206, %v367
  %369 = vmatprep.mubr.f32.mxu0 0.0
  %370 = vmatmul.mubr.f32.gmra.mrb[0].mxu0 %v267
  %v371 = vpop.f32.mrb[0].mxu0
  %v372 = vadd.f32 %v211, %v371
  %v373 = vpop.f32.mrb[0].mxu0
  %v374 = vadd.f32 %v211, %v373
  %375 = vmatprep.mubr.f32.mxu0 0.0
  %376 = vmatmul.mubr.f32.gmra.mrb[0].mxu0 %v270
  %v377 = vpop.f32.mrb[0].mxu0
  %v378 = vadd.f32 %v216, %v377
  %v379 = vpop.f32.mrb[0].mxu0
  %v380 = vadd.f32 %v216, %v379
  %381 = vmatprep.mubr.f32.mxu0 0.0
  %382 = vmatmul.mubr.f32.gmra.mrb[0].mxu0 %v273
  %v383 = vpop.f32.mrb[0].mxu0
  %v384 = vadd.f32 %v221, %v383
  %v385 = vpop.f32.mrb[0].mxu0
  %v386 = vadd.f32 %v221, %v385
  %387 = vmatprep.mubr.f32.mxu0 0.0
  %388 = vmatmul.mubr.f32.gmra.mrb[0].mxu0 %v276
  %v389 = vpop.f32.mrb[0].mxu0
  %v390 = vadd.f32 %v226, %v389
  %v391 = vpop.f32.mrb[0].mxu0
  %v392 = vadd.f32 %v226, %v391
  %393 = vmatprep.mubr.f32.mxu0 0.0
  %394 = vmatmul.mubr.f32.gmra.mrb[0].mxu0 %v279
  %v395 = vpop.f32.mrb[0].mxu0
  %v396 = vadd.f32 %v231, %v395
  %v397 = vpop.f32.mrb[0].mxu0
  %v398 = vadd.f32 %v231, %v397
  %399 = vmatprep.mubr.f32.mxu0 0.0
  %400 = vmatmul.mubr.f32.gmra.mrb[0].mxu0 %v282
  %v401 = vpop.f32.mrb[0].mxu0
  %v402 = vadd.f32 %v236, %v401
  %v403 = vpop.f32.mrb[0].mxu0
  %v404 = vadd.f32 %v236, %v403
  %405 = vmatprep.mubr.f32.mxu0 0.0
  %406 = vmatmul.mubr.f32.gmra.mrb[0].mxu0 %v285
  %v407 = vpop.f32.mrb[0].mxu0
  %v408 = vadd.f32 %v241, %v407
  %v409 = vpop.f32.mrb[0].mxu0
  %v410 = vadd.f32 %v241, %v409
  %411 = vmatprep.mubr.f32.mxu0 0.0
  %412 = vmatmul.mubr.f32.gmra.mrb[0].mxu0 %v288
  %v413 = vpop.f32.mrb[0].mxu0
  %v414 = vadd.f32 %v246, %v413
  %v415 = vpop.f32.mrb[0].mxu0
  %v416 = vadd.f32 %v246, %v415
  %417 = vmatprep.mubr.f32.mxu0 0.0
  %418 = vmatmul.mubr.f32.gmra.mrb[0].mxu0 %v291
  %v419 = vpop.f32.mrb[0].mxu0
  %v420 = vadd.f32 %v251, %v419
  %v421 = vpop.f32.mrb[0].mxu0
  %v422 = vadd.f32 %v251, %v421
  %423 = vmatprep.mubr.f32.mxu0 0.0
  %424 = vmatmul.mubr.f32.gmra.mrb[0].mxu0 %v294
  %v425 = vpop.f32.mrb[0].mxu0
  %v426 = vadd.f32 %v256, %v425
  %v427 = vpop.f32.mrb[0].mxu0
  %v428 = vadd.f32 %v256, %v427
  %429 = vmatprep.mubr.f32.mxu0 0.0
  %430 = vmatmul.mubr.f32.gmra.mrb[0].mxu0 %v297
  %v431 = vpop.f32.mrb[0].mxu0
  %v432 = vadd.f32 %v261, %v431
  %v433 = vpop.f32.mrb[0].mxu0
  %v434 = vadd.f32 %v261, %v433
  %435 = vdwg.mxu0
  %436 = vst [vmem:[%s4] sm:$0xff] %v366
  %437 = vst [vmem:[%s4 + $0x8] sm:$0xff] %v368
  %438 = vst [vmem:[%s4 + $0x10] sm:$0xff] %v372
  %439 = vst [vmem:[%s4 + $0x18] sm:$0xff] %v374
  %440 = vst [vmem:[%s4 + $0x20] sm:$0xff] %v378
  %441 = vst [vmem:[%s4 + $0x28] sm:$0xff] %v380
  %442 = vst [vmem:[%s4 + $0x30] sm:$0xff] %v384
  %443 = vst [vmem:[%s4 + $0x38] sm:$0xff] %v386
  %444 = vst [vmem:[%s4 + $0x40] sm:$0xff] %v390
  %445 = vst [vmem:[%s4 + $0x48] sm:$0xff] %v392
  %446 = vst [vmem:[%s4 + $0x50] sm:$0xff] %v396
  %447 = vst [vmem:[%s4 + $0x58] sm:$0xff] %v398
  %448 = vst [vmem:[%s4 + $0x60] sm:$0xff] %v402
  %449 = vst [vmem:[%s4 + $0x68] sm:$0xff] %v404
  %450 = vst [vmem:[%s4 + $0x70] sm:$0xff] %v408
  %451 = vst [vmem:[%s4 + $0x78] sm:$0xff] %v410
  %452 = vst [vmem:[%s4 + $0x80] sm:$0xff] %v414
  %453 = vst [vmem:[%s4 + $0x88] sm:$0xff] %v416
  %454 = vst [vmem:[%s4 + $0x90] sm:$0xff] %v420
  %455 = vst [vmem:[%s4 + $0x98] sm:$0xff] %v422
  %456 = vst [vmem:[%s4 + $0xa0] sm:$0xff] %v426
  %457 = vst [vmem:[%s4 + $0xa8] sm:$0xff] %v428
  %458 = vst [vmem:[%s4 + $0xb0] sm:$0xff] %v432
  %459 = vst [vmem:[%s4 + $0xb8] sm:$0xff] %v434
  // Predicated region
  $region18: #{fcn_upsampling_forward.1} parent=0 // pred_check
    _
  $region19: #{fcn_upsampling_forward.1} parent=0 // pred_check_branch
    %461 = sbr.rel (0) target = $region21
  $region20: #{fcn_upsampling_forward.1} parent=0 // pred_region
    _
  $region21: #{fcn_upsampling_forward.1} parent=0 // pred_fallthru
    _
  // Predicated region
  $region22: #{fcn_upsampling_forward.1} parent=0 // pred_check
    _
  $region23: #{fcn_upsampling_forward.1} parent=0 // pred_check_branch
    %463 = sbr.rel (0) target = $region25
  $region24: #{fcn_upsampling_forward.1} parent=0 // pred_region
    _
  $region25: #{fcn_upsampling_forward.1} parent=0 // pred_fallthru
    _

</llo_original>
